<compile_context>
chip_gen: v6e
topology: v6e:2x2x1
jax: 0.10.0
libtpu: 0.0.40
codegen_flags: <defaults>
</compile_context>

<pallas_src>
import math

import jax
import jax.numpy as jnp
from jax import lax
from jax.experimental import pallas as pl
from jax.experimental.pallas import tpu as pltpu

HEAD_SIZE = 8
N_HEADS = 4
D_MODEL = HEAD_SIZE * N_HEADS  # 32


def mha_kernel(x_ref, wqkv_ref, bqkv_ref, wo_ref, bo_ref, hsel_ref, bias_ref,
               o_ref, ctx_ref):
    """One grid step = `rows` sequence positions (b_tile whole sequences)."""
    rows, d_model = x_ref.shape
    H = hsel_ref.shape[0]
    gt = bias_ref.shape[1]            # rows per attention sub-group (G * T)
    n_groups = rows // gt
    cdt = wqkv_ref.dtype              # MXU operand dtype (bf16 by default)

    # Fused QKV projection: one (rows, D) x (D, 3D) matmul, f32 accumulation.
    qkv = jnp.dot(x_ref[...], wqkv_ref[...],
                  preferred_element_type=jnp.float32) + bqkv_ref[...]
    q = qkv[:, 0 * d_model:1 * d_model].astype(cdt)   # pre-scaled by 1/sqrt(head_size)
    k = qkv[:, 1 * d_model:2 * d_model].astype(cdt)
    v = qkv[:, 2 * d_model:3 * d_model].astype(cdt)

    hsel = hsel_ref[...]              # (H, 1, D) 0/1 head-feature mask
    bias = bias_ref[...]              # (H*gt, gt) additive causal + same-sequence mask

    # Attention core per sub-group of G sequences: heads stacked along rows so scores
    # and P@V are each one plain 2-D MXU contraction; all softmax math stays f32.
    for g in range(n_groups):         # short static loop (typically 1-4 iterations)
        lo = g * gt
        q_g = q[lo:lo + gt, :]
        k_g = k[lo:lo + gt, :]
        v_g = v[lo:lo + gt, :]

        # (1, gt, D) * (H, 1, D) -> (H, gt, D) -> (H*gt, D): no concat, no big sel.
        qh = (q_g[None, :, :] * hsel).reshape(H * gt, d_model)

        scores = lax.dot_general(                       # qh @ k_g.T
            qh, k_g, (((1,), (1,)), ((), ())),
            preferred_element_type=jnp.float32)         # (H*gt, gt)
        scores = scores + bias

        m = jnp.max(scores, axis=-1, keepdims=True)
        e = jnp.exp(scores - m)
        s = jnp.sum(e, axis=-1, keepdims=True)
        p = (e * pl.reciprocal(s, approx=True)).astype(cdt)

        ctx = jnp.dot(p, v_g, preferred_element_type=jnp.float32)   # (H*gt, D)
        ctx = (ctx.reshape(H, gt, d_model) * hsel).sum(axis=0)      # (gt, D)
        ctx_ref[lo:lo + gt, :] = ctx.astype(cdt)

    # Output projection over the full row tile.
    y = jnp.dot(ctx_ref[...], wo_ref[...],
                preferred_element_type=jnp.float32) + bo_ref[...]
    o_ref[...] = y.astype(o_ref.dtype)


def _pick_b_tile(B, T, target_rows):
    """Largest divisor of B whose tile fits target_rows; prefer an even grid (v7x)."""
    aligned = [d for d in range(1, B + 1)
               if B % d == 0 and (d == B or (d * T) % 8 == 0)]
    fit = [d for d in aligned if d * T <= max(T, target_rows)]
    cand = fit if fit else aligned[:1]
    best = max(cand)
    if B // best > 1:                 # keep both v7x TensorCores evenly loaded
        even = [d for d in cand if (B // d) % 2 == 0]
        if even:
            best = max(even)
    return best


def _pick_seq_group(b_tile, T, group_lanes):
    """Sequences per attention sub-group: G*T ~= group_lanes and G divides b_tile."""
    g = min(b_tile, max(1, group_lanes // T))
    while b_tile % g:
        g -= 1
    return g


def multi_head_attention(x, params, *, compute_dtype=jnp.bfloat16, target_rows=512,
                         group_lanes=128, vmem_limit_bytes=None):
    """Forward pass of the PyTorch MultiHeadAttention module.

    x: (B, T, D) float32.  params: weights stored as (in, out), biases as (1, out).
    """
    B, T, D = x.shape
    assert D == D_MODEL
    H, hs = N_HEADS, HEAD_SIZE

    b_tile = _pick_b_tile(B, T, target_rows)
    rows = b_tile * T
    grid_len = B // b_tile
    G = _pick_seq_group(b_tile, T, group_lanes)
    gt = G * T
    n_groups = b_tile // G
    assert rows % gt == 0

    # Fused QKV weights / bias; fold 1/sqrt(hs) into the Q columns (free at runtime).
    inv = 1.0 / math.sqrt(hs)
    wqkv = jnp.concatenate(
        [params["wq"] * inv, params["wk"], params["wv"]], axis=1).astype(compute_dtype)
    bqkv = jnp.concatenate(
        [params["bq"] * inv, params["bk"], params["bv"]], axis=1).astype(jnp.float32)
    wo = params["wo"].astype(compute_dtype)
    bo = params["bo"].astype(jnp.float32)

    # Tiny (H, 1, D) head-feature mask (replaces the old (H*rows, D) `sel` input).
    hsel = (jnp.arange(H)[:, None, None] ==
            (jnp.arange(D)[None, None, :] // hs)).astype(compute_dtype)

    # Per-group additive causal mask, head-tiled along rows; finite -1e30 is NaN-safe.
    r = jnp.arange(H * gt)[:, None] % gt
    c = jnp.arange(gt)[None, :]
    keep = ((r // T) == (c // T)) & (c <= r)            # same sequence & causal
    bias = jnp.where(keep, 0.0, -1e30).astype(jnp.float32)

    x2 = x.reshape(B * T, D).astype(compute_dtype)
    itemsize = jnp.dtype(compute_dtype).itemsize

    # Advisory cost estimate so XLA can schedule the surrounding graph sensibly.
    flops = grid_len * (2 * rows * D * 3 * D                      # QKV projection
                        + n_groups * 4 * (H * gt) * gt * D        # scores + P@V
                        + 2 * rows * D * D)                       # output projection
    transcendentals = grid_len * n_groups * H * gt * gt           # exp
    bytes_accessed = (x2.size * itemsize + B * T * D * 4
                      + wqkv.size * itemsize + wo.size * itemsize
                      + bqkv.size * 4 + bo.size * 4
                      + bias.size * 4 + hsel.size * itemsize)
    cost = pl.CostEstimate(flops=int(flops), transcendentals=int(transcendentals),
                           bytes_accessed=int(bytes_accessed))

    cp_kwargs = dict(dimension_semantics=("parallel",))
    if vmem_limit_bytes is not None:
        cp_kwargs["vmem_limit_bytes"] = int(vmem_limit_bytes)

    def run(single_buffer_invariants):
        def const_spec(shape):
            idx = lambda i: (0,) * len(shape)
            if single_buffer_invariants:
                # Grid-invariant blocks are never re-fetched: single-buffer them.
                return pl.BlockSpec(shape, idx, pipeline_mode=pl.Buffered(1))
            return pl.BlockSpec(shape, idx)

        out = pl.pallas_call(
            mha_kernel,
            out_shape=jax.ShapeDtypeStruct((B * T, D), jnp.float32),
            grid_spec=pltpu.PrefetchScalarGridSpec(
                num_scalar_prefetch=0,
                grid=(grid_len,),
                in_specs=[
                    pl.BlockSpec((rows, D), lambda i: (i, 0)),    # x rows
                    const_spec((D, 3 * D)),                       # fused Wqkv
                    const_spec((1, 3 * D)),                       # fused bqkv
                    const_spec((D, D)),                           # Wo
                    const_spec((1, D)),                           # bo
                    const_spec((H, 1, D)),                        # head-feature mask
                    const_spec((H * gt, gt)),                     # causal/segment bias
                ],
                out_specs=pl.BlockSpec((rows, D), lambda i: (i, 0)),
                scratch_shapes=[pltpu.VMEM((rows, D), compute_dtype)],
            ),
            compiler_params=pltpu.CompilerParams(**cp_kwargs),
            cost_estimate=cost,
        )(x2, wqkv, bqkv, wo, bo, hsel, bias)
        return jax.block_until_ready(out)

    try:
        out = run(True)
    except Exception:
        # pl.Buffered(1) unsupported on this jax version -> default double buffering.
        out = run(False)
    return out.reshape(B, T, D)


def init_params(key):
    """nn.Linear-style init U(-1/sqrt(in), 1/sqrt(in)); weights stored as (in, out)."""
    bound = 1.0 / math.sqrt(D_MODEL)
    keys = jax.random.split(key, 8)

    def w(k):
        return jax.random.uniform(k, (D_MODEL, D_MODEL), jnp.float32, -bound, bound)

    def b(k):
        return jax.random.uniform(k, (1, D_MODEL), jnp.float32, -bound, bound)

    return {
        "wq": w(keys[0]), "bq": b(keys[1]),
        "wk": w(keys[2]), "bk": b(keys[3]),
        "wv": w(keys[4]), "bv": b(keys[5]),
        "wo": w(keys[6]), "bo": b(keys[7]),
    }


def reference_mha(x, p):
    B, T, D = x.shape
    H, hs = N_HEADS, HEAD_SIZE
    q = (x @ p["wq"] + p["bq"][0]).reshape(B, T, H, hs).transpose(0, 2, 1, 3)
    k = (x @ p["wk"] + p["bk"][0]).reshape(B, T, H, hs).transpose(0, 2, 1, 3)
    v = (x @ p["wv"] + p["bv"][0]).reshape(B, T, H, hs).transpose(0, 2, 1, 3)
    attn = jnp.einsum("bhtd,bhsd->bhts", q, k) / math.sqrt(hs)
    mask = jnp.tril(jnp.ones((T, T), jnp.bool_))
    attn = jnp.where(mask, attn, -jnp.inf)
    attn = jax.nn.softmax(attn, axis=-1)
    out = jnp.einsum("bhts,bhsd->bhtd", attn, v)
    out = out.transpose(0, 2, 1, 3).reshape(B, T, D)
    return out @ p["wo"] + p["bo"][0]


if __name__ == "__main__":
    key = jax.random.PRNGKey(0)
    kx, kp = jax.random.split(key)
    B, T = 2, 8
    x = jax.random.normal(kx, (B, T, D_MODEL), jnp.float32)
    params = init_params(kp)
    ref = reference_mha(x, params)

    # Default path: bf16 MXU operands, f32 accumulation + f32 softmax.
    out = jax.block_until_ready(multi_head_attention(x, params))
    assert out.shape == (B, T, D_MODEL)
    assert jnp.allclose(out, ref, atol=5e-2, rtol=5e-2), "bf16 mismatch vs reference"

    # f32 MXU operands: tight-tolerance check of the kernel logic.
    out_f32 = jax.block_until_ready(
        multi_head_attention(x, params, compute_dtype=jnp.float32))
    assert jnp.allclose(out_f32, ref, atol=1e-2, rtol=1e-2), "f32 mismatch vs reference"

    # Larger batch exercises the sub-grouped attention core (gt=128, 4 groups, grid=1)
    # and a multi-step even grid (target_rows=256 -> grid=2).
    B2 = 64
    x_big = jax.random.normal(jax.random.PRNGKey(1), (B2, T, D_MODEL), jnp.float32)
    ref_big = reference_mha(x_big, params)
    out_big = jax.block_until_ready(multi_head_attention(x_big, params))
    assert jnp.allclose(out_big, ref_big, atol=5e-2, rtol=5e-2), "batched mismatch"
    out_grid = jax.block_until_ready(
        multi_head_attention(x_big, params, target_rows=256))
    assert jnp.allclose(out_grid, ref_big, atol=5e-2, rtol=5e-2), "multi-step mismatch"

    print("KERNEL_OK")
</pallas_src>

<mosaic_0001>
module attributes {stable_mosaic.version = 11 : i64} {
  func.func @mha_kernel(%arg0: i32, %arg1: memref<16x32xbf16, #tpu.memory_space<vmem>>, %arg2: memref<32x96xbf16, #tpu.memory_space<vmem>>, %arg3: memref<1x96xf32, #tpu.memory_space<vmem>>, %arg4: memref<32x32xbf16, #tpu.memory_space<vmem>>, %arg5: memref<1x32xf32, #tpu.memory_space<vmem>>, %arg6: memref<4x1x32xbf16, #tpu.memory_space<vmem>>, %arg7: memref<64x16xf32, #tpu.memory_space<vmem>>, %arg8: memref<16x32xf32, #tpu.memory_space<vmem>>, %arg9: memref<16x32xbf16, #tpu.memory_space<vmem>>) attributes {dimension_semantics = [#tpu.dimension_semantics<parallel>], iteration_bounds = array<i64: 1>, scalar_prefetch = 0 : i64, scratch_operands = 1 : i64, tpu.core_type = #tpu.core_type<tc>, window_params = [{transform_indices = @transform_0, window_bounds = array<i64: 16, 32>}, {pipeline_mode = #tpu.pipeline_mode<synchronous>, transform_indices = @transform_1, window_bounds = array<i64: 32, 96>}, {pipeline_mode = #tpu.pipeline_mode<synchronous>, transform_indices = @transform_2, window_bounds = array<i64: 1, 96>}, {pipeline_mode = #tpu.pipeline_mode<synchronous>, transform_indices = @transform_3, window_bounds = array<i64: 32, 32>}, {pipeline_mode = #tpu.pipeline_mode<synchronous>, transform_indices = @transform_4, window_bounds = array<i64: 1, 32>}, {pipeline_mode = #tpu.pipeline_mode<synchronous>, transform_indices = @transform_5, window_bounds = array<i64: 4, 1, 32>}, {pipeline_mode = #tpu.pipeline_mode<synchronous>, transform_indices = @transform_6, window_bounds = array<i64: 64, 16>}, {transform_indices = @transform_7, window_bounds = array<i64: 16, 32>}]} {
    %c0 = arith.constant 0 : index
    %c0_0 = arith.constant 0 : index
    %0 = vector.load %arg1[%c0, %c0_0] : memref<16x32xbf16, #tpu.memory_space<vmem>>, vector<16x32xbf16>
    %c0_1 = arith.constant 0 : index
    %c0_2 = arith.constant 0 : index
    %1 = vector.load %arg2[%c0_1, %c0_2] : memref<32x96xbf16, #tpu.memory_space<vmem>>, vector<32x96xbf16>
    %cst = arith.constant dense<0.000000e+00> : vector<16x96xf32>
    %2 = tpu.matmul %0, %1, %cst {dimension_numbers = #tpu.dot_dimension_numbers<[1], [0], [0], [1], [0, 0, 1, 1], [], []>} : vector<16x32xbf16>, vector<32x96xbf16>, vector<16x96xf32> -> vector<16x96xf32>
    %c0_3 = arith.constant 0 : index
    %c0_4 = arith.constant 0 : index
    %3 = vector.load %arg3[%c0_3, %c0_4] : memref<1x96xf32, #tpu.memory_space<vmem>>, vector<1x96xf32>
    %4 = vector.broadcast %3 : vector<1x96xf32> to vector<16x96xf32>
    %5 = arith.addf %2, %4 : vector<16x96xf32>
    %6 = vector.extract_strided_slice %5 {offsets = [0, 0], sizes = [16, 32], strides = [1, 1]} : vector<16x96xf32> to vector<16x32xf32>
    %7 = arith.truncf %6 : vector<16x32xf32> to vector<16x32xbf16>
    %8 = vector.extract_strided_slice %5 {offsets = [0, 32], sizes = [16, 32], strides = [1, 1]} : vector<16x96xf32> to vector<16x32xf32>
    %9 = arith.truncf %8 : vector<16x32xf32> to vector<16x32xbf16>
    %10 = vector.extract_strided_slice %5 {offsets = [0, 64], sizes = [16, 32], strides = [1, 1]} : vector<16x96xf32> to vector<16x32xf32>
    %11 = arith.truncf %10 : vector<16x32xf32> to vector<16x32xbf16>
    %c0_5 = arith.constant 0 : index
    %c0_6 = arith.constant 0 : index
    %c0_7 = arith.constant 0 : index
    %12 = vector.load %arg6[%c0_5, %c0_6, %c0_7] : memref<4x1x32xbf16, #tpu.memory_space<vmem>>, vector<4x1x32xbf16>
    %c0_8 = arith.constant 0 : index
    %c0_9 = arith.constant 0 : index
    %13 = vector.load %arg7[%c0_8, %c0_9] : memref<64x16xf32, #tpu.memory_space<vmem>>, vector<64x16xf32>
    %14 = vector.shape_cast %7 : vector<16x32xbf16> to vector<1x16x32xbf16>
    %15 = vector.broadcast %14 : vector<1x16x32xbf16> to vector<4x16x32xbf16>
    %16 = vector.broadcast %12 : vector<4x1x32xbf16> to vector<4x16x32xbf16>
    %17 = arith.mulf %15, %16 : vector<4x16x32xbf16>
    %18 = vector.shape_cast %17 : vector<4x16x32xbf16> to vector<64x32xbf16>
    %cst_10 = arith.constant dense<0.000000e+00> : vector<64x16xf32>
    %19 = tpu.matmul %18, %9, %cst_10 {dimension_numbers = #tpu.dot_dimension_numbers<[1], [1], [0], [0], [0, 0, 1, 0], [], []>} : vector<64x32xbf16>, vector<16x32xbf16>, vector<64x16xf32> -> vector<64x16xf32>
    %20 = arith.addf %19, %13 : vector<64x16xf32>
    %cst_11 = arith.constant dense<0xFF800000> : vector<64xf32>
    %21 = vector.multi_reduction <maximumf>, %20, %cst_11 [1] : vector<64x16xf32> to vector<64xf32>
    %22 = vector.shape_cast %21 : vector<64xf32> to vector<64x1xf32>
    %23 = vector.broadcast %22 : vector<64x1xf32> to vector<64x16xf32>
    %24 = arith.subf %20, %23 : vector<64x16xf32>
    %25 = math.exp %24 : vector<64x16xf32>
    %cst_12 = arith.constant dense<0.000000e+00> : vector<64xf32>
    %26 = vector.multi_reduction <add>, %25, %cst_12 [1] : vector<64x16xf32> to vector<64xf32>
    %27 = vector.shape_cast %26 : vector<64xf32> to vector<64x1xf32>
    %28 = tpu.reciprocal %27 {approx = true} : vector<64x1xf32> -> vector<64x1xf32>
    %29 = vector.broadcast %28 : vector<64x1xf32> to vector<64x16xf32>
    %30 = arith.mulf %25, %29 : vector<64x16xf32>
    %31 = arith.truncf %30 : vector<64x16xf32> to vector<64x16xbf16>
    %cst_13 = arith.constant dense<0.000000e+00> : vector<64x32xf32>
    %32 = tpu.matmul %31, %11, %cst_13 {dimension_numbers = #tpu.dot_dimension_numbers<[1], [0], [0], [1], [0, 0, 1, 1], [], []>} : vector<64x16xbf16>, vector<16x32xbf16>, vector<64x32xf32> -> vector<64x32xf32>
    %33 = vector.shape_cast %32 : vector<64x32xf32> to vector<4x16x32xf32>
    %34 = arith.extf %12 : vector<4x1x32xbf16> to vector<4x1x32xf32>
    %35 = vector.broadcast %34 : vector<4x1x32xf32> to vector<4x16x32xf32>
    %36 = arith.mulf %33, %35 : vector<4x16x32xf32>
    %cst_14 = arith.constant dense<0.000000e+00> : vector<16x32xf32>
    %37 = vector.multi_reduction <add>, %36, %cst_14 [0] : vector<4x16x32xf32> to vector<16x32xf32>
    %38 = arith.truncf %37 : vector<16x32xf32> to vector<16x32xbf16>
    %c0_15 = arith.constant 0 : index
    %c0_16 = arith.constant 0 : index
    %39 = vector.load %arg9[%c0_15, %c0_16] : memref<16x32xbf16, #tpu.memory_space<vmem>>, vector<16x32xbf16>
    tpu.vector_store %arg9[%c0_15, %c0_16], %38 {strides = array<i32>} : memref<16x32xbf16, #tpu.memory_space<vmem>>, vector<16x32xbf16>,
    %c0_17 = arith.constant 0 : index
    %c0_18 = arith.constant 0 : index
    %40 = vector.load %arg9[%c0_17, %c0_18] : memref<16x32xbf16, #tpu.memory_space<vmem>>, vector<16x32xbf16>
    %c0_19 = arith.constant 0 : index
    %c0_20 = arith.constant 0 : index
    %41 = vector.load %arg4[%c0_19, %c0_20] : memref<32x32xbf16, #tpu.memory_space<vmem>>, vector<32x32xbf16>
    %cst_21 = arith.constant dense<0.000000e+00> : vector<16x32xf32>
    %42 = tpu.matmul %40, %41, %cst_21 {dimension_numbers = #tpu.dot_dimension_numbers<[1], [0], [0], [1], [0, 0, 1, 1], [], []>} : vector<16x32xbf16>, vector<32x32xbf16>, vector<16x32xf32> -> vector<16x32xf32>
    %c0_22 = arith.constant 0 : index
    %c0_23 = arith.constant 0 : index
    %43 = vector.load %arg5[%c0_22, %c0_23] : memref<1x32xf32, #tpu.memory_space<vmem>>, vector<1x32xf32>
    %44 = vector.broadcast %43 : vector<1x32xf32> to vector<16x32xf32>
    %45 = arith.addf %42, %44 : vector<16x32xf32>
    %c0_24 = arith.constant 0 : index
    %c0_25 = arith.constant 0 : index
    %46 = vector.load %arg8[%c0_24, %c0_25] : memref<16x32xf32, #tpu.memory_space<vmem>>, vector<16x32xf32>
    tpu.vector_store %arg8[%c0_24, %c0_25], %45 {strides = array<i32>} : memref<16x32xf32, #tpu.memory_space<vmem>>, vector<16x32xf32>,
    return
  }
  func.func @transform_0(%arg0: i32) -> (i32, i32) {
    %c0_i32 = arith.constant 0 : i32
    %c0_i32_0 = arith.constant 0 : i32
    return %arg0, %c0_i32 : i32, i32
  }
  func.func @transform_1(%arg0: i32) -> (i32, i32) {
    %c0_i32 = arith.constant 0 : i32
    %c0_i32_0 = arith.constant 0 : i32
    %c0_i32_1 = arith.constant 0 : i32
    return %c0_i32, %c0_i32_0 : i32, i32
  }
  func.func @transform_2(%arg0: i32) -> (i32, i32) {
    %c0_i32 = arith.constant 0 : i32
    %c0_i32_0 = arith.constant 0 : i32
    %c0_i32_1 = arith.constant 0 : i32
    return %c0_i32, %c0_i32_0 : i32, i32
  }
  func.func @transform_3(%arg0: i32) -> (i32, i32) {
    %c0_i32 = arith.constant 0 : i32
    %c0_i32_0 = arith.constant 0 : i32
    %c0_i32_1 = arith.constant 0 : i32
    return %c0_i32, %c0_i32_0 : i32, i32
  }
  func.func @transform_4(%arg0: i32) -> (i32, i32) {
    %c0_i32 = arith.constant 0 : i32
    %c0_i32_0 = arith.constant 0 : i32
    %c0_i32_1 = arith.constant 0 : i32
    return %c0_i32, %c0_i32_0 : i32, i32
  }
  func.func @transform_5(%arg0: i32) -> (i32, i32, i32) {
    %c0_i32 = arith.constant 0 : i32
    %c0_i32_0 = arith.constant 0 : i32
    %c0_i32_1 = arith.constant 0 : i32
    %c0_i32_2 = arith.constant 0 : i32
    return %c0_i32, %c0_i32_0, %c0_i32_1 : i32, i32, i32
  }
  func.func @transform_6(%arg0: i32) -> (i32, i32) {
    %c0_i32 = arith.constant 0 : i32
    %c0_i32_0 = arith.constant 0 : i32
    %c0_i32_1 = arith.constant 0 : i32
    return %c0_i32, %c0_i32_0 : i32, i32
  }
  func.func @transform_7(%arg0: i32) -> (i32, i32) {
    %c0_i32 = arith.constant 0 : i32
    %c0_i32_0 = arith.constant 0 : i32
    return %arg0, %c0_i32 : i32, i32
  }
}

module attributes {stable_mosaic.version = 11 : i64} {
  func.func @mha_kernel(%arg0: i32, %arg1: memref<16x32xbf16, #tpu.memory_space<vmem>>, %arg2: memref<32x96xbf16, #tpu.memory_space<vmem>>, %arg3: memref<1x96xf32, #tpu.memory_space<vmem>>, %arg4: memref<32x32xbf16, #tpu.memory_space<vmem>>, %arg5: memref<1x32xf32, #tpu.memory_space<vmem>>, %arg6: memref<4x1x32xbf16, #tpu.memory_space<vmem>>, %arg7: memref<64x16xf32, #tpu.memory_space<vmem>>, %arg8: memref<16x32xf32, #tpu.memory_space<vmem>>, %arg9: memref<16x32xbf16, #tpu.memory_space<vmem>>) attributes {dimension_semantics = [#tpu.dimension_semantics<parallel>], iteration_bounds = array<i64: 1>, scalar_prefetch = 0 : i64, scratch_operands = 1 : i64, tpu.core_type = #tpu.core_type<tc>, window_params = [{transform_indices = @transform_0, window_bounds = array<i64: 16, 32>}, {pipeline_mode = #tpu.pipeline_mode<synchronous>, transform_indices = @transform_1, window_bounds = array<i64: 32, 96>}, {pipeline_mode = #tpu.pipeline_mode<synchronous>, transform_indices = @transform_2, window_bounds = array<i64: 1, 96>}, {pipeline_mode = #tpu.pipeline_mode<synchronous>, transform_indices = @transform_3, window_bounds = array<i64: 32, 32>}, {pipeline_mode = #tpu.pipeline_mode<synchronous>, transform_indices = @transform_4, window_bounds = array<i64: 1, 32>}, {pipeline_mode = #tpu.pipeline_mode<synchronous>, transform_indices = @transform_5, window_bounds = array<i64: 4, 1, 32>}, {pipeline_mode = #tpu.pipeline_mode<synchronous>, transform_indices = @transform_6, window_bounds = array<i64: 64, 16>}, {transform_indices = @transform_7, window_bounds = array<i64: 16, 32>}]} {
    %c0 = arith.constant 0 : index
    %c0_0 = arith.constant 0 : index
    %0 = vector.load %arg1[%c0, %c0_0] : memref<16x32xbf16, #tpu.memory_space<vmem>>, vector<16x32xbf16>
    %c0_1 = arith.constant 0 : index
    %c0_2 = arith.constant 0 : index
    %1 = vector.load %arg2[%c0_1, %c0_2] : memref<32x96xbf16, #tpu.memory_space<vmem>>, vector<32x96xbf16>
    %cst = arith.constant dense<0.000000e+00> : vector<16x96xf32>
    %2 = tpu.matmul %0, %1, %cst {dimension_numbers = #tpu.dot_dimension_numbers<[1], [0], [0], [1], [0, 0, 1, 1], [], []>} : vector<16x32xbf16>, vector<32x96xbf16>, vector<16x96xf32> -> vector<16x96xf32>
    %c0_3 = arith.constant 0 : index
    %c0_4 = arith.constant 0 : index
    %3 = vector.load %arg3[%c0_3, %c0_4] : memref<1x96xf32, #tpu.memory_space<vmem>>, vector<1x96xf32>
    %4 = vector.broadcast %3 : vector<1x96xf32> to vector<16x96xf32>
    %5 = arith.addf %2, %4 : vector<16x96xf32>
    %6 = vector.extract_strided_slice %5 {offsets = [0, 0], sizes = [16, 32], strides = [1, 1]} : vector<16x96xf32> to vector<16x32xf32>
    %7 = arith.truncf %6 : vector<16x32xf32> to vector<16x32xbf16>
    %8 = vector.extract_strided_slice %5 {offsets = [0, 32], sizes = [16, 32], strides = [1, 1]} : vector<16x96xf32> to vector<16x32xf32>
    %9 = arith.truncf %8 : vector<16x32xf32> to vector<16x32xbf16>
    %10 = vector.extract_strided_slice %5 {offsets = [0, 64], sizes = [16, 32], strides = [1, 1]} : vector<16x96xf32> to vector<16x32xf32>
    %11 = arith.truncf %10 : vector<16x32xf32> to vector<16x32xbf16>
    %c0_5 = arith.constant 0 : index
    %c0_6 = arith.constant 0 : index
    %c0_7 = arith.constant 0 : index
    %12 = vector.load %arg6[%c0_5, %c0_6, %c0_7] : memref<4x1x32xbf16, #tpu.memory_space<vmem>>, vector<4x1x32xbf16>
    %c0_8 = arith.constant 0 : index
    %c0_9 = arith.constant 0 : index
    %13 = vector.load %arg7[%c0_8, %c0_9] : memref<64x16xf32, #tpu.memory_space<vmem>>, vector<64x16xf32>
    %14 = vector.shape_cast %7 : vector<16x32xbf16> to vector<1x16x32xbf16>
    %15 = vector.broadcast %14 : vector<1x16x32xbf16> to vector<4x16x32xbf16>
    %16 = vector.broadcast %12 : vector<4x1x32xbf16> to vector<4x16x32xbf16>
    %17 = arith.mulf %15, %16 : vector<4x16x32xbf16>
    %18 = vector.shape_cast %17 : vector<4x16x32xbf16> to vector<64x32xbf16>
    %cst_10 = arith.constant dense<0.000000e+00> : vector<64x16xf32>
    %19 = tpu.matmul %18, %9, %cst_10 {dimension_numbers = #tpu.dot_dimension_numbers<[1], [1], [0], [0], [0, 0, 1, 0], [], []>} : vector<64x32xbf16>, vector<16x32xbf16>, vector<64x16xf32> -> vector<64x16xf32>
    %20 = arith.addf %19, %13 : vector<64x16xf32>
    %cst_11 = arith.constant dense<0xFF800000> : vector<64xf32>
    %21 = vector.multi_reduction <maximumf>, %20, %cst_11 [1] : vector<64x16xf32> to vector<64xf32>
    %22 = vector.shape_cast %21 : vector<64xf32> to vector<64x1xf32>
    %23 = vector.broadcast %22 : vector<64x1xf32> to vector<64x16xf32>
    %24 = arith.subf %20, %23 : vector<64x16xf32>
    %25 = math.exp %24 : vector<64x16xf32>
    %cst_12 = arith.constant dense<0.000000e+00> : vector<64xf32>
    %26 = vector.multi_reduction <add>, %25, %cst_12 [1] : vector<64x16xf32> to vector<64xf32>
    %27 = vector.shape_cast %26 : vector<64xf32> to vector<64x1xf32>
    %28 = tpu.reciprocal %27 {approx = true} : vector<64x1xf32> -> vector<64x1xf32>
    %29 = vector.broadcast %28 : vector<64x1xf32> to vector<64x16xf32>
    %30 = arith.mulf %25, %29 : vector<64x16xf32>
    %31 = arith.truncf %30 : vector<64x16xf32> to vector<64x16xbf16>
    %cst_13 = arith.constant dense<0.000000e+00> : vector<64x32xf32>
    %32 = tpu.matmul %31, %11, %cst_13 {dimension_numbers = #tpu.dot_dimension_numbers<[1], [0], [0], [1], [0, 0, 1, 1], [], []>} : vector<64x16xbf16>, vector<16x32xbf16>, vector<64x32xf32> -> vector<64x32xf32>
    %33 = vector.shape_cast %32 : vector<64x32xf32> to vector<4x16x32xf32>
    %34 = arith.extf %12 : vector<4x1x32xbf16> to vector<4x1x32xf32>
    %35 = vector.broadcast %34 : vector<4x1x32xf32> to vector<4x16x32xf32>
    %36 = arith.mulf %33, %35 : vector<4x16x32xf32>
    %cst_14 = arith.constant dense<0.000000e+00> : vector<16x32xf32>
    %37 = vector.multi_reduction <add>, %36, %cst_14 [0] : vector<4x16x32xf32> to vector<16x32xf32>
    %38 = arith.truncf %37 : vector<16x32xf32> to vector<16x32xbf16>
    %c0_15 = arith.constant 0 : index
    %c0_16 = arith.constant 0 : index
    %39 = vector.load %arg9[%c0_15, %c0_16] : memref<16x32xbf16, #tpu.memory_space<vmem>>, vector<16x32xbf16>
    tpu.vector_store %arg9[%c0_15, %c0_16], %38 {strides = array<i32>} : memref<16x32xbf16, #tpu.memory_space<vmem>>, vector<16x32xbf16>,
    %c0_17 = arith.constant 0 : index
    %c0_18 = arith.constant 0 : index
    %40 = vector.load %arg9[%c0_17, %c0_18] : memref<16x32xbf16, #tpu.memory_space<vmem>>, vector<16x32xbf16>
    %c0_19 = arith.constant 0 : index
    %c0_20 = arith.constant 0 : index
    %41 = vector.load %arg4[%c0_19, %c0_20] : memref<32x32xbf16, #tpu.memory_space<vmem>>, vector<32x32xbf16>
    %cst_21 = arith.constant dense<0.000000e+00> : vector<16x32xf32>
    %42 = tpu.matmul %40, %41, %cst_21 {dimension_numbers = #tpu.dot_dimension_numbers<[1], [0], [0], [1], [0, 0, 1, 1], [], []>} : vector<16x32xbf16>, vector<32x32xbf16>, vector<16x32xf32> -> vector<16x32xf32>
    %c0_22 = arith.constant 0 : index
    %c0_23 = arith.constant 0 : index
    %43 = vector.load %arg5[%c0_22, %c0_23] : memref<1x32xf32, #tpu.memory_space<vmem>>, vector<1x32xf32>
    %44 = vector.broadcast %43 : vector<1x32xf32> to vector<16x32xf32>
    %45 = arith.addf %42, %44 : vector<16x32xf32>
    %c0_24 = arith.constant 0 : index
    %c0_25 = arith.constant 0 : index
    %46 = vector.load %arg8[%c0_24, %c0_25] : memref<16x32xf32, #tpu.memory_space<vmem>>, vector<16x32xf32>
    tpu.vector_store %arg8[%c0_24, %c0_25], %45 {strides = array<i32>} : memref<16x32xf32, #tpu.memory_space<vmem>>, vector<16x32xf32>,
    return
  }
  func.func @transform_0(%arg0: i32) -> (i32, i32) {
    %c0_i32 = arith.constant 0 : i32
    %c0_i32_0 = arith.constant 0 : i32
    return %arg0, %c0_i32 : i32, i32
  }
  func.func @transform_1(%arg0: i32) -> (i32, i32) {
    %c0_i32 = arith.constant 0 : i32
    %c0_i32_0 = arith.constant 0 : i32
    %c0_i32_1 = arith.constant 0 : i32
    return %c0_i32, %c0_i32_0 : i32, i32
  }
  func.func @transform_2(%arg0: i32) -> (i32, i32) {
    %c0_i32 = arith.constant 0 : i32
    %c0_i32_0 = arith.constant 0 : i32
    %c0_i32_1 = arith.constant 0 : i32
    return %c0_i32, %c0_i32_0 : i32, i32
  }
  func.func @transform_3(%arg0: i32) -> (i32, i32) {
    %c0_i32 = arith.constant 0 : i32
    %c0_i32_0 = arith.constant 0 : i32
    %c0_i32_1 = arith.constant 0 : i32
    return %c0_i32, %c0_i32_0 : i32, i32
  }
  func.func @transform_4(%arg0: i32) -> (i32, i32) {
    %c0_i32 = arith.constant 0 : i32
    %c0_i32_0 = arith.constant 0 : i32
    %c0_i32_1 = arith.constant 0 : i32
    return %c0_i32, %c0_i32_0 : i32, i32
  }
  func.func @transform_5(%arg0: i32) -> (i32, i32, i32) {
    %c0_i32 = arith.constant 0 : i32
    %c0_i32_0 = arith.constant 0 : i32
    %c0_i32_1 = arith.constant 0 : i32
    %c0_i32_2 = arith.constant 0 : i32
    return %c0_i32, %c0_i32_0, %c0_i32_1 : i32, i32, i32
  }
  func.func @transform_6(%arg0: i32) -> (i32, i32) {
    %c0_i32 = arith.constant 0 : i32
    %c0_i32_0 = arith.constant 0 : i32
    %c0_i32_1 = arith.constant 0 : i32
    return %c0_i32, %c0_i32_0 : i32, i32
  }
  func.func @transform_7(%arg0: i32) -> (i32, i32) {
    %c0_i32 = arith.constant 0 : i32
    %c0_i32_0 = arith.constant 0 : i32
    return %arg0, %c0_i32 : i32, i32
  }
}

</mosaic_0001>

<llo_original>
// kernel: tpu_custom_call.1
$region0: #{tpu_custom_call.1}
  #allocation0 [shape = 'u32[]', space=smem, size = 0x4, offset = 0x4, fixed_abs, tag = 'smem constant byte address 0x4 - core index']
  #allocation1 [shape = 'u32[144,128]{1,0:T(1,128)}', space=vmem, size = 0x12000, scoped, tag = 'internal scratch']
  #allocation2 [shape = 'bf16[16,32]{1,0:T(8,128)(2,1)}', space=vmem, size = 0x1000, scoped, tag = 'scratch operand']
  %s0 = inlined_call_operand.vmem [shape: bf16[16,32], index: 0, kind: input, shape index: {}]
  %s1 = inlined_call_operand.vmem [shape: bf16[32,96], index: 1, kind: input, shape index: {}]
  %s2 = inlined_call_operand.vmem [shape: f32[1,96], index: 2, kind: input, shape index: {}]
  %s3 = inlined_call_operand.vmem [shape: bf16[32,32], index: 3, kind: input, shape index: {}]
  %s4 = inlined_call_operand.vmem [shape: f32[1,32], index: 4, kind: input, shape index: {}]
  %s5 = inlined_call_operand.vmem [shape: bf16[4,1,32], index: 5, kind: input, shape index: {}]
  %s6 = inlined_call_operand.vmem [shape: f32[64,16], index: 6, kind: input, shape index: {}]
  %s7 = inlined_call_operand.hbm [shape: f32[16,32], index: 7, kind: output, shape index: {}]
  %s8 = sld [smem:[#allocation0]]
  $region38: #{tpu_custom_call.1} parent=0
    _
  %s10 = ssub.s32 1, %s8
  %s11 = scalar_select 0, %s10, %s8
  $region1: #{tpu_custom_call.1} parent=0
    #allocation3 [shape = 'u8[8192]{0}', space=vmem, size = 0x2000, scoped, tag = 'output window, operand 0, single buffered']
    #allocation4 [shape = 's32[1]{0}', space=sflag, size = 0x4, scoped, tag = 'scoped memory for tpu_custom_call.1']
    %12 = vsyncpa [#allocation4], 0
    // Predicated region
    $region2: #{tpu_custom_call.1} parent=1 // pred_check
      _
    $region3: #{tpu_custom_call.1} parent=1 // pred_check_branch
      %14 = sbr.rel (0) target = $region5
    $region4: #{tpu_custom_call.1} parent=1 // pred_region
      _
    $region5: #{tpu_custom_call.1} parent=1 // pred_fallthru
      _
    // Predicated region
    $region6: #{tpu_custom_call.1} parent=1 // pred_check
      _
    $region7: #{tpu_custom_call.1} parent=1 // pred_check_branch
      %16 = sbr.rel (0) target = $region9
    $region8: #{tpu_custom_call.1} parent=1 // pred_region
      _
    $region9: #{tpu_custom_call.1} parent=1 // pred_fallthru
      _
    // Predicated region
    $region10: #{tpu_custom_call.1} parent=1 // pred_check
      _
    $region11: #{tpu_custom_call.1} parent=1 // pred_check_branch
      %18 = sbr.rel (0) target = $region13
    $region12: #{tpu_custom_call.1} parent=1 // pred_region
      _
    $region13: #{tpu_custom_call.1} parent=1 // pred_fallthru
      _
    // Predicated region
    $region14: #{tpu_custom_call.1} parent=1 // pred_check
      _
    $region15: #{tpu_custom_call.1} parent=1 // pred_check_branch
      %20 = sbr.rel (0) target = $region17
    $region16: #{tpu_custom_call.1} parent=1 // pred_region
      _
    $region17: #{tpu_custom_call.1} parent=1 // pred_fallthru
      _
    // Predicated region
    $region18: #{tpu_custom_call.1} parent=1 // pred_check
      _
    $region19: #{tpu_custom_call.1} parent=1 // pred_check_branch
      %22 = sbr.rel (0) target = $region21
    $region20: #{tpu_custom_call.1} parent=1 // pred_region
      _
    $region21: #{tpu_custom_call.1} parent=1 // pred_fallthru
      _
    // Predicated region
    $region22: #{tpu_custom_call.1} parent=1 // pred_check
      _
    $region23: #{tpu_custom_call.1} parent=1 // pred_check_branch
      %24 = sbr.rel (0) target = $region25
    $region24: #{tpu_custom_call.1} parent=1 // pred_region
      _
    $region25: #{tpu_custom_call.1} parent=1 // pred_fallthru
      _
    // Predicated region
    $region26: #{tpu_custom_call.1} parent=1 // pred_check
      _
    $region27: #{tpu_custom_call.1} parent=1 // pred_check_branch
      %26 = sbr.rel (0) target = $region29
    $region28: #{tpu_custom_call.1} parent=1 // pred_region
      _
    $region29: #{tpu_custom_call.1} parent=1 // pred_fallthru
      _
    %v28 = vld [vmem:[%s0] sm:$0xf]
    %v29 = vld [vmem:[%s0 + $0x4] sm:$0xf]
    %v30 = vld [vmem:[%s1] sm:$0xf]
    %v31 = vld [vmem:[%s1 + $0x4] sm:$0xf]
    %v32 = vld [vmem:[%s1 + $0x8] sm:$0xf]
    %v33 = vld [vmem:[%s1 + $0xc] sm:$0xf]
    %v34 = vld [vmem:[%s2] sm:$0x1]
    %v36 = vlaneseq
    %v37 = vshrl.u32 %v36, 7
    %v38 = vsub.s32 0, %v37
    %v39 = vrot.slane %v34, %v38
    %v43 = vunpack.c.l.b16 %v28
    %v44 = vunpack.c.l.b16 %v29
    %v45 = vpack.c.b16 %v44, %v43
    %v50 = vunpack.c.l.b16 %v30
    %v51 = vunpack.c.l.b16 %v31
    %v52 = vunpack.c.l.b16 %v32
    %v53 = vunpack.c.l.b16 %v33
    %v54 = vpack.c.b16 %v51, %v50
    %v55 = vpack.c.b16 %v53, %v52
    %vm58 = vcmask 261120
    %v60 = vsel %vm58, %v45, 0
    %62 = vmatprep.subr.bf16.mxu0 0
    %63 = vmatpush1.bf16.msra.mxu0 0
    %64 = vmatprep.subr.bf16.mxu0 0
    %65 = vmatpush1.bf16.msra.mxu0 0
    %66 = vmatprep.subr.bf16.mxu0 0
    %67 = vmatpush1.bf16.msra.mxu0 0
    %68 = vmatprep.subr.bf16.mxu0 0
    %69 = vmatpush1.bf16.msra.mxu0 0
    %70 = vmatprep.subr.bf16.mxu0 0
    %71 = vmatpush1.bf16.msra.mxu0 0
    %72 = vmatprep.subr.bf16.mxu0 0
    %73 = vmatpush1.bf16.msra.mxu0 0
    %74 = vmatprep.subr.bf16.mxu0 0
    %75 = vmatpush1.bf16.msra.mxu0 %v55
    %76 = vmatprep.subr.bf16.mxu0 0
    %77 = vmatpush1.bf16.msra.mxu0 %v54
    %78 = vmatprep.subr.bf16.mxu0 0
    %79 = vmatpush2.bf16.msra.mxu0 0
    %80 = vmatprep.subr.bf16.mxu0 0
    %81 = vmatpush2.bf16.msra.mxu0 0
    %82 = vmatprep.subr.bf16.mxu0 0
    %83 = vmatpush2.bf16.msra.mxu0 0
    %84 = vmatprep.subr.bf16.mxu0 0
    %85 = vmatpush2.bf16.msra.mxu0 0
    %86 = vmatprep.subr.bf16.mxu0 0
    %87 = vmatpush2.bf16.msra.mxu0 0
    %88 = vmatprep.subr.bf16.mxu0 0
    %89 = vmatpush2.bf16.msra.mxu0 0
    %90 = vmatprep.subr.bf16.mxu0 0
    %91 = vmatpush2.bf16.msra.mxu0 0
    %92 = vmatprep.subr.bf16.mxu0 0
    %93 = vmatpush2.bf16.msra.mxu0 0
    %94 = vmatprep.mubr.bf16.mxu0 0
    %95 = vmatmul.mubr.bf16.gmra.mxu0 %v60
    %v96 = vpop.f32.mrf.mxu0
    %v97 = vadd.f32 %v39, %v96
    %v98 = vpop.f32.mrf.mxu0
    %v99 = vpop.f32.mrf.mxu0
    %v100 = vadd.f32 %v39, %v99
    %v101 = vpop.f32.mrf.mxu0
    %102 = vdwg.mxu0
    %v103 = vpack.c.bf16 %v100, %v97
    %v104 = vld [vmem:[%s5] sm:$0x1]
    %v105 = vld [vmem:[%s5 + $0x1] sm:$0x1]
    %v106 = vld [vmem:[%s5 + $0x2] sm:$0x1]
    %v107 = vld [vmem:[%s5 + $0x3] sm:$0x1]
    %v108 = vld [vmem:[%s6] sm:$0xff]
    %v109 = vld [vmem:[%s6 + $0x8] sm:$0xff]
    %v110 = vld [vmem:[%s6 + $0x10] sm:$0xff]
    %v111 = vld [vmem:[%s6 + $0x18] sm:$0xff]
    %v112 = vld [vmem:[%s6 + $0x20] sm:$0xff]
    %v113 = vld [vmem:[%s6 + $0x28] sm:$0xff]
    %v114 = vld [vmem:[%s6 + $0x30] sm:$0xff]
    %v115 = vld [vmem:[%s6 + $0x38] sm:$0xff]
    %v117 = vpack.i.b16 %v104, %v104
    %v119 = vlaneseq
    %v120 = vshrl.u32 %v119, 7
    %v121 = vsub.s32 0, %v120
    %v122 = vrot.slane %v117, %v121
    %v124 = vpack.i.b16 %v105, %v105
    %v126 = vlaneseq
    %v127 = vshrl.u32 %v126, 7
    %v128 = vsub.s32 0, %v127
    %v129 = vrot.slane %v124, %v128
    %v131 = vpack.i.b16 %v106, %v106
    %v133 = vlaneseq
    %v134 = vshrl.u32 %v133, 7
    %v135 = vsub.s32 0, %v134
    %v136 = vrot.slane %v131, %v135
    %v138 = vpack.i.b16 %v107, %v107
    %v140 = vlaneseq
    %v141 = vshrl.u32 %v140, 7
    %v142 = vsub.s32 0, %v141
    %v143 = vrot.slane %v138, %v142
    %v144 = vmul.bf16 %v103, %v122
    %v145 = vmul.bf16 %v103, %v129
    %v146 = vmul.bf16 %v103, %v136
    %v147 = vmul.bf16 %v103, %v143
    %149 = vrot.lane.b32.xlu0 %v103, 96
    %v150 = vpop.permute.xlu0 %149
    %v152 = vsel %vm58, %v144, 0
    %v155 = vsel %vm58, %v145, 0
    %v158 = vsel %vm58, %v146, 0
    %v161 = vsel %vm58, %v147, 0
    %v164 = vsel %vm58, %v150, 0
    %166 = vmatprep.subr.bf16.mxu0 0
    %167 = vmatpush1.bf16.xpose.msra.mxu0 0
    %168 = vmatprep.subr.bf16.mxu0 0
    %169 = vmatpush1.bf16.xpose.msra.mxu0 0
    %170 = vmatprep.subr.bf16.mxu0 0
    %171 = vmatpush1.bf16.xpose.msra.mxu0 0
    %172 = vmatprep.subr.bf16.mxu0 0
    %173 = vmatpush1.bf16.xpose.msra.mxu0 0
    %174 = vmatprep.subr.bf16.mxu0 0
    %175 = vmatpush1.bf16.xpose.msra.mxu0 0
    %176 = vmatprep.subr.bf16.mxu0 0
    %177 = vmatpush1.bf16.xpose.msra.mxu0 0
    %178 = vmatprep.subr.bf16.mxu0 0
    %179 = vmatpush1.bf16.xpose.msra.mxu0 0
    %180 = vmatprep.subr.bf16.mxu0 0
    %181 = vmatpush1.bf16.xpose.msra.mxu0 %v164
    %182 = vmatprep.subr.bf16.mxu0 0
    %183 = vmatpush2.bf16.xpose.msra.mxu0 0
    %184 = vmatprep.subr.bf16.mxu0 0
    %185 = vmatpush2.bf16.xpose.msra.mxu0 0
    %186 = vmatprep.subr.bf16.mxu0 0
    %187 = vmatpush2.bf16.xpose.msra.mxu0 0
    %188 = vmatprep.subr.bf16.mxu0 0
    %189 = vmatpush2.bf16.xpose.msra.mxu0 0
    %190 = vmatprep.subr.bf16.mxu0 0
    %191 = vmatpush2.bf16.xpose.msra.mxu0 0
    %192 = vmatprep.subr.bf16.mxu0 0
    %193 = vmatpush2.bf16.xpose.msra.mxu0 0
    %194 = vmatprep.subr.bf16.mxu0 0
    %195 = vmatpush2.bf16.xpose.msra.mxu0 0
    %196 = vmatprep.subr.bf16.mxu0 0
    %197 = vmatpush2.bf16.xpose.msra.mxu0 0
    %198 = vmatprep.mubr.bf16.mxu0 0
    %199 = vmatmul.mubr.bf16.gmra.mxu0 %v152
    %v200 = vpop.f32.mrf.mxu0
    %v201 = vadd.f32 %v108, %v200
    %v202 = vpop.f32.mrf.mxu0
    %v203 = vpop.f32.mrf.mxu0
    %v204 = vadd.f32 %v109, %v203
    %v205 = vpop.f32.mrf.mxu0
    %206 = vmatprep.mubr.bf16.mxu0 0
    %207 = vmatmul.mubr.bf16.gmra.mxu0 %v155
    %v208 = vpop.f32.mrf.mxu0
    %v209 = vadd.f32 %v110, %v208
    %v210 = vpop.f32.mrf.mxu0
    %v211 = vpop.f32.mrf.mxu0
    %v212 = vadd.f32 %v111, %v211
    %v213 = vpop.f32.mrf.mxu0
    %214 = vmatprep.mubr.bf16.mxu0 0
    %215 = vmatmul.mubr.bf16.gmra.mxu0 %v158
    %v216 = vpop.f32.mrf.mxu0
    %v217 = vadd.f32 %v112, %v216
    %v218 = vpop.f32.mrf.mxu0
    %v219 = vpop.f32.mrf.mxu0
    %v220 = vadd.f32 %v113, %v219
    %v221 = vpop.f32.mrf.mxu0
    %222 = vmatprep.mubr.bf16.mxu0 0
    %223 = vmatmul.mubr.bf16.gmra.mxu0 %v161
    %v224 = vpop.f32.mrf.mxu0
    %v225 = vadd.f32 %v114, %v224
    %v226 = vpop.f32.mrf.mxu0
    %v227 = vpop.f32.mrf.mxu0
    %v228 = vadd.f32 %v115, %v227
    %v229 = vpop.f32.mrf.mxu0
    %230 = vdwg.mxu0
    %vm231 = vcmask 130048
    %v232 = vsel %vm231, %v201, -inf
    %233 = vmax.xlane.f32.xlu0 %v232
    %v234 = vpop.xlane.xlu0 %233
    %v235 = vsel %vm231, %v204, -inf
    %236 = vmax.xlane.f32.xlu0 %v235
    %v237 = vpop.xlane.xlu0 %236
    %v238 = vsel %vm231, %v209, -inf
    %239 = vmax.xlane.f32.xlu0 %v238
    %v240 = vpop.xlane.xlu0 %239
    %v241 = vsel %vm231, %v212, -inf
    %242 = vmax.xlane.f32.xlu0 %v241
    %v243 = vpop.xlane.xlu0 %242
    %v244 = vsel %vm231, %v217, -inf
    %245 = vmax.xlane.f32.xlu0 %v244
    %v246 = vpop.xlane.xlu0 %245
    %v247 = vsel %vm231, %v220, -inf
    %248 = vmax.xlane.f32.xlu0 %v247
    %v249 = vpop.xlane.xlu0 %248
    %v250 = vsel %vm231, %v225, -inf
    %251 = vmax.xlane.f32.xlu0 %v250
    %v252 = vpop.xlane.xlu0 %251
    %v253 = vsel %vm231, %v228, -inf
    %254 = vmax.xlane.f32.xlu0 %v253
    %v255 = vpop.xlane.xlu0 %254
    %v256 = vsub.f32 %v201, %v234
    %v257 = vsub.f32 %v204, %v237
    %v258 = vsub.f32 %v209, %v240
    %v259 = vsub.f32 %v212, %v243
    %v260 = vsub.f32 %v217, %v246
    %v261 = vsub.f32 %v220, %v249
    %v262 = vsub.f32 %v225, %v252
    %v263 = vsub.f32 %v228, %v255
    %v264 = vmul.f32 %v256, 1.442695
    %v265 = vpow.pop %v264
    %v266 = vmul.f32 %v257, 1.442695
    %v267 = vpow.pop %v266
    %v268 = vmul.f32 %v258, 1.442695
    %v269 = vpow.pop %v268
    %v270 = vmul.f32 %v259, 1.442695
    %v271 = vpow.pop %v270
    %v272 = vmul.f32 %v260, 1.442695
    %v273 = vpow.pop %v272
    %v274 = vmul.f32 %v261, 1.442695
    %v275 = vpow.pop %v274
    %v276 = vmul.f32 %v262, 1.442695
    %v277 = vpow.pop %v276
    %v278 = vmul.f32 %v263, 1.442695
    %v279 = vpow.pop %v278
    %v280 = vsel %vm231, %v265, 0.0
    %281 = vadd.xlane.f32.xlu0 %v280
    %v282 = vpop.xlane.xlu0 %281
    %v283 = vsel %vm231, %v267, 0.0
    %284 = vadd.xlane.f32.xlu0 %v283
    %v285 = vpop.xlane.xlu0 %284
    %v286 = vsel %vm231, %v269, 0.0
    %287 = vadd.xlane.f32.xlu0 %v286
    %v288 = vpop.xlane.xlu0 %287
    %v289 = vsel %vm231, %v271, 0.0
    %290 = vadd.xlane.f32.xlu0 %v289
    %v291 = vpop.xlane.xlu0 %290
    %v292 = vsel %vm231, %v273, 0.0
    %293 = vadd.xlane.f32.xlu0 %v292
    %v294 = vpop.xlane.xlu0 %293
    %v295 = vsel %vm231, %v275, 0.0
    %296 = vadd.xlane.f32.xlu0 %v295
    %v297 = vpop.xlane.xlu0 %296
    %v298 = vsel %vm231, %v277, 0.0
    %299 = vadd.xlane.f32.xlu0 %v298
    %v300 = vpop.xlane.xlu0 %299
    %v301 = vsel %vm231, %v279, 0.0
    %302 = vadd.xlane.f32.xlu0 %v301
    %v303 = vpop.xlane.xlu0 %302
    %v304 = vrcp.pop %v282
    %v305 = vrcp.pop %v285
    %v306 = vrcp.pop %v288
    %v307 = vrcp.pop %v291
    %v308 = vrcp.pop %v294
    %v309 = vrcp.pop %v297
    %v310 = vrcp.pop %v300
    %v311 = vrcp.pop %v303
    %v312 = vmul.f32 %v265, %v304
    %v313 = vmul.f32 %v267, %v305
    %v314 = vmul.f32 %v269, %v306
    %v315 = vmul.f32 %v271, %v307
    %v316 = vmul.f32 %v273, %v308
    %v317 = vmul.f32 %v275, %v309
    %v318 = vmul.f32 %v277, %v310
    %v319 = vmul.f32 %v279, %v311
    %v320 = vpack.c.bf16 %v313, %v312
    %v321 = vpack.c.bf16 %v315, %v314
    %v322 = vpack.c.bf16 %v317, %v316
    %v323 = vpack.c.bf16 %v319, %v318
    %324 = vrot.lane.b32.xlu0 %v103, 64
    %v325 = vpop.permute.xlu0 %324
    %v328 = vsel %vm231, %v320, 0
    %v331 = vsel %vm231, %v321, 0
    %v334 = vsel %vm231, %v322, 0
    %v337 = vsel %vm231, %v323, 0
    %339 = vmatprep.subr.bf16.mxu0 0
    %340 = vmatpush1.bf16.msra.mxu0 0
    %341 = vmatprep.subr.bf16.mxu0 0
    %342 = vmatpush1.bf16.msra.mxu0 0
    %343 = vmatprep.subr.bf16.mxu0 0
    %344 = vmatpush1.bf16.msra.mxu0 0
    %345 = vmatprep.subr.bf16.mxu0 0
    %346 = vmatpush1.bf16.msra.mxu0 0
    %347 = vmatprep.subr.bf16.mxu0 0
    %348 = vmatpush1.bf16.msra.mxu0 0
    %349 = vmatprep.subr.bf16.mxu0 0
    %350 = vmatpush1.bf16.msra.mxu0 0
    %351 = vmatprep.subr.bf16.mxu0 0
    %352 = vmatpush1.bf16.msra.mxu0 0
    %353 = vmatprep.subr.bf16.mxu0 0
    %354 = vmatpush1.bf16.msra.mxu0 %v325
    %355 = vmatprep.subr.bf16.mxu0 0
    %356 = vmatpush2.bf16.msra.mxu0 0
    %357 = vmatprep.subr.bf16.mxu0 0
    %358 = vmatpush2.bf16.msra.mxu0 0
    %359 = vmatprep.subr.bf16.mxu0 0
    %360 = vmatpush2.bf16.msra.mxu0 0
    %361 = vmatprep.subr.bf16.mxu0 0
    %362 = vmatpush2.bf16.msra.mxu0 0
    %363 = vmatprep.subr.bf16.mxu0 0
    %364 = vmatpush2.bf16.msra.mxu0 0
    %365 = vmatprep.subr.bf16.mxu0 0
    %366 = vmatpush2.bf16.msra.mxu0 0
    %367 = vmatprep.subr.bf16.mxu0 0
    %368 = vmatpush2.bf16.msra.mxu0 0
    %369 = vmatprep.subr.bf16.mxu0 0
    %370 = vmatpush2.bf16.msra.mxu0 0
    %371 = vmatprep.mubr.bf16.mxu0 0
    %372 = vmatmul.mubr.bf16.gmra.mxu0 %v328
    %v373 = vpop.f32.mrf.mxu0
    %v374 = vadd.f32 0.0, %v373
    %v375 = vpop.f32.mrf.mxu0
    %v376 = vpop.f32.mrf.mxu0
    %v377 = vadd.f32 0.0, %v376
    %v378 = vpop.f32.mrf.mxu0
    %379 = vmatprep.mubr.bf16.mxu0 0
    %380 = vmatmul.mubr.bf16.gmra.mxu0 %v331
    %v381 = vpop.f32.mrf.mxu0
    %v382 = vadd.f32 0.0, %v381
    %v383 = vpop.f32.mrf.mxu0
    %v384 = vpop.f32.mrf.mxu0
    %v385 = vadd.f32 0.0, %v384
    %v386 = vpop.f32.mrf.mxu0
    %387 = vmatprep.mubr.bf16.mxu0 0
    %388 = vmatmul.mubr.bf16.gmra.mxu0 %v334
    %v389 = vpop.f32.mrf.mxu0
    %v390 = vadd.f32 0.0, %v389
    %v391 = vpop.f32.mrf.mxu0
    %v392 = vpop.f32.mrf.mxu0
    %v393 = vadd.f32 0.0, %v392
    %v394 = vpop.f32.mrf.mxu0
    %395 = vmatprep.mubr.bf16.mxu0 0
    %396 = vmatmul.mubr.bf16.gmra.mxu0 %v337
    %v397 = vpop.f32.mrf.mxu0
    %v398 = vadd.f32 0.0, %v397
    %v399 = vpop.f32.mrf.mxu0
    %v400 = vpop.f32.mrf.mxu0
    %v401 = vadd.f32 0.0, %v400
    %v402 = vpop.f32.mrf.mxu0
    %403 = vdwg.mxu0
    %v404 = vunpack.c.l.bf16 %v104
    %v405 = vunpack.c.l.bf16 %v105
    %v406 = vunpack.c.l.bf16 %v106
    %v407 = vunpack.c.l.bf16 %v107
    %v408 = vlaneseq
    %v409 = vshrl.u32 %v408, 7
    %v410 = vsub.s32 0, %v409
    %v411 = vrot.slane %v404, %v410
    %v412 = vlaneseq
    %v413 = vshrl.u32 %v412, 7
    %v414 = vsub.s32 0, %v413
    %v415 = vrot.slane %v405, %v414
    %v416 = vlaneseq
    %v417 = vshrl.u32 %v416, 7
    %v418 = vsub.s32 0, %v417
    %v419 = vrot.slane %v406, %v418
    %v420 = vlaneseq
    %v421 = vshrl.u32 %v420, 7
    %v422 = vsub.s32 0, %v421
    %v423 = vrot.slane %v407, %v422
    %v424 = vmul.f32 %v374, %v411
    %v425 = vmul.f32 %v377, %v411
    %v426 = vmul.f32 %v382, %v415
    %v427 = vmul.f32 %v385, %v415
    %v428 = vmul.f32 %v390, %v419
    %v429 = vmul.f32 %v393, %v419
    %v430 = vmul.f32 %v398, %v423
    %v431 = vmul.f32 %v401, %v423
    %v432 = vsel %vm58, %v424, 0.0
    %v433 = vsel %vm58, %v426, 0.0
    %v434 = vadd.f32 %v432, %v433
    %v435 = vsel %vm58, %v428, 0.0
    %v436 = vadd.f32 %v434, %v435
    %v437 = vsel %vm58, %v430, 0.0
    %v438 = vadd.f32 %v436, %v437
    %v439 = vsel %vm58, %v425, 0.0
    %v440 = vsel %vm58, %v427, 0.0
    %v441 = vadd.f32 %v439, %v440
    %v442 = vsel %vm58, %v429, 0.0
    %v443 = vadd.f32 %v441, %v442
    %v444 = vsel %vm58, %v431, 0.0
    %v445 = vadd.f32 %v443, %v444
    %v446 = vpack.c.bf16 %v445, %v438
    %v448 = vunpack.c.l.b16 %v446
    %v449 = vunpack.c.h.b16 %v446
    %v450 = vpack.c.b16 %v448, %v448
    %v451 = vpack.c.b16 %v449, %v449
    %vm454 = vcmask 257024
    %455 = vst.msk [vmem:[#allocation2] sm:$0xf] %vm454, %v450
    %456 = vst.msk [vmem:[#allocation2 + $0x4] sm:$0xf] %vm454, %v451
    %v457 = vld [vmem:[#allocation2] sm:$0xf]
    %v458 = vld [vmem:[#allocation2 + $0x4] sm:$0xf]
    %v459 = vld [vmem:[%s3] sm:$0xf]
    %v460 = vld [vmem:[%s3 + $0x4] sm:$0xf]
    %v461 = vld [vmem:[%s3 + $0x8] sm:$0xf]
    %v462 = vld [vmem:[%s3 + $0xc] sm:$0xf]
    %v463 = vld [vmem:[%s4] sm:$0x1]
    %v465 = vlaneseq
    %v466 = vshrl.u32 %v465, 7
    %v467 = vsub.s32 0, %v466
    %v468 = vrot.slane %v463, %v467
    %v472 = vunpack.c.l.b16 %v457
    %v473 = vunpack.c.l.b16 %v458
    %v474 = vpack.c.b16 %v473, %v472
    %v479 = vunpack.c.l.b16 %v459
    %v480 = vunpack.c.l.b16 %v460
    %v481 = vunpack.c.l.b16 %v461
    %v482 = vunpack.c.l.b16 %v462
    %v483 = vpack.c.b16 %v480, %v479
    %v484 = vpack.c.b16 %v482, %v481
    %v488 = vsel %vm58, %v474, 0
    %490 = vmatprep.subr.bf16.mxu0 0
    %491 = vmatpush1.bf16.msra.mxu0 0
    %492 = vmatprep.subr.bf16.mxu0 0
    %493 = vmatpush1.bf16.msra.mxu0 0
    %494 = vmatprep.subr.bf16.mxu0 0
    %495 = vmatpush1.bf16.msra.mxu0 0
    %496 = vmatprep.subr.bf16.mxu0 0
    %497 = vmatpush1.bf16.msra.mxu0 0
    %498 = vmatprep.subr.bf16.mxu0 0
    %499 = vmatpush1.bf16.msra.mxu0 0
    %500 = vmatprep.subr.bf16.mxu0 0
    %501 = vmatpush1.bf16.msra.mxu0 0
    %502 = vmatprep.subr.bf16.mxu0 0
    %503 = vmatpush1.bf16.msra.mxu0 %v484
    %504 = vmatprep.subr.bf16.mxu0 0
    %505 = vmatpush1.bf16.msra.mxu0 %v483
    %506 = vmatprep.subr.bf16.mxu0 0
    %507 = vmatpush2.bf16.msra.mxu0 0
    %508 = vmatprep.subr.bf16.mxu0 0
    %509 = vmatpush2.bf16.msra.mxu0 0
    %510 = vmatprep.subr.bf16.mxu0 0
    %511 = vmatpush2.bf16.msra.mxu0 0
    %512 = vmatprep.subr.bf16.mxu0 0
    %513 = vmatpush2.bf16.msra.mxu0 0
    %514 = vmatprep.subr.bf16.mxu0 0
    %515 = vmatpush2.bf16.msra.mxu0 0
    %516 = vmatprep.subr.bf16.mxu0 0
    %517 = vmatpush2.bf16.msra.mxu0 0
    %518 = vmatprep.subr.bf16.mxu0 0
    %519 = vmatpush2.bf16.msra.mxu0 0
    %520 = vmatprep.subr.bf16.mxu0 0
    %521 = vmatpush2.bf16.msra.mxu0 0
    %522 = vmatprep.mubr.bf16.mxu0 0
    %523 = vmatmul.mubr.bf16.gmra.mxu0 %v488
    %v524 = vpop.f32.mrf.mxu0
    %v525 = vadd.f32 %v468, %v524
    %v526 = vpop.f32.mrf.mxu0
    %v527 = vpop.f32.mrf.mxu0
    %v528 = vadd.f32 %v468, %v527
    %v529 = vpop.f32.mrf.mxu0
    %530 = vdwg.mxu0
    %531 = vst.msk [vmem:[#allocation3] sm:$0xff] %vm58, %v525
    %532 = vst.msk [vmem:[#allocation3 + $0x8] sm:$0xff] %vm58, %v528
    // Predicated region
    $region30: #{tpu_custom_call.1} parent=1 // pred_check
      _
    $region31: #{tpu_custom_call.1} parent=1 // pred_check_branch
      %534 = sbr.rel (0) target = $region33
    $region32: #{tpu_custom_call.1} parent=1 // pred_region
      %s536 = ssub.s32 256, 256
      %537 = vsyncadd [#allocation4], %s536
      %s538 = sshll.u32 [#allocation3], 4
      %s539 = int_to_ptr.vmem [resolvable:$true] %s538
      %544 = dma.vmem_to_hbm [thread:$0]  %s539, 256, %s7, [#allocation4], 128, 128, 8
    $region33: #{tpu_custom_call.1} parent=1 // pred_fallthru
      _
    // Predicated region
    $region34: #{tpu_custom_call.1} parent=1 // pred_check
      _
    $region35: #{tpu_custom_call.1} parent=1 // pred_check_branch
      %546 = sbr.rel (0) target = $region37
    $region36: #{tpu_custom_call.1} parent=1 // pred_region
      %547 = dma.done [#allocation4], 256
    $region37: #{tpu_custom_call.1} parent=1 // pred_fallthru
      _
    %548 = vsyncpa [#allocation4], 1

// kernel: tpu_custom_call.1
$region0: #{tpu_custom_call.1}
  #allocation0 [shape = 'u32[]', space=smem, size = 0x4, offset = 0x4, fixed_abs, tag = 'smem constant byte address 0x4 - core index']
  #allocation1 [shape = 'u32[144,128]{1,0:T(1,128)}', space=vmem, size = 0x12000, scoped, tag = 'internal scratch']
  #allocation2 [shape = 'bf16[16,32]{1,0:T(8,128)(2,1)}', space=vmem, size = 0x1000, scoped, tag = 'scratch operand']
  %s0 = inlined_call_operand.vmem [shape: bf16[16,32], index: 0, kind: input, shape index: {}]
  %s1 = inlined_call_operand.vmem [shape: bf16[32,96], index: 1, kind: input, shape index: {}]
  %s2 = inlined_call_operand.vmem [shape: f32[1,96], index: 2, kind: input, shape index: {}]
  %s3 = inlined_call_operand.vmem [shape: bf16[32,32], index: 3, kind: input, shape index: {}]
  %s4 = inlined_call_operand.vmem [shape: f32[1,32], index: 4, kind: input, shape index: {}]
  %s5 = inlined_call_operand.vmem [shape: bf16[4,1,32], index: 5, kind: input, shape index: {}]
  %s6 = inlined_call_operand.vmem [shape: f32[64,16], index: 6, kind: input, shape index: {}]
  %s7 = inlined_call_operand.hbm [shape: f32[16,32], index: 7, kind: output, shape index: {}]
  %s8 = sld [smem:[#allocation0]]
  $region38: #{tpu_custom_call.1} parent=0
    _
  %s10 = ssub.s32 1, %s8
  %s11 = scalar_select 0, %s10, %s8
  $region1: #{tpu_custom_call.1} parent=0
    #allocation3 [shape = 'u8[8192]{0}', space=vmem, size = 0x2000, scoped, tag = 'output window, operand 0, single buffered']
    #allocation4 [shape = 's32[1]{0}', space=sflag, size = 0x4, scoped, tag = 'scoped memory for tpu_custom_call.1']
    %12 = vsyncpa [#allocation4], 0
    // Predicated region
    $region2: #{tpu_custom_call.1} parent=1 // pred_check
      _
    $region3: #{tpu_custom_call.1} parent=1 // pred_check_branch
      %14 = sbr.rel (0) target = $region5
    $region4: #{tpu_custom_call.1} parent=1 // pred_region
      _
    $region5: #{tpu_custom_call.1} parent=1 // pred_fallthru
      _
    // Predicated region
    $region6: #{tpu_custom_call.1} parent=1 // pred_check
      _
    $region7: #{tpu_custom_call.1} parent=1 // pred_check_branch
      %16 = sbr.rel (0) target = $region9
    $region8: #{tpu_custom_call.1} parent=1 // pred_region
      _
    $region9: #{tpu_custom_call.1} parent=1 // pred_fallthru
      _
    // Predicated region
    $region10: #{tpu_custom_call.1} parent=1 // pred_check
      _
    $region11: #{tpu_custom_call.1} parent=1 // pred_check_branch
      %18 = sbr.rel (0) target = $region13
    $region12: #{tpu_custom_call.1} parent=1 // pred_region
      _
    $region13: #{tpu_custom_call.1} parent=1 // pred_fallthru
      _
    // Predicated region
    $region14: #{tpu_custom_call.1} parent=1 // pred_check
      _
    $region15: #{tpu_custom_call.1} parent=1 // pred_check_branch
      %20 = sbr.rel (0) target = $region17
    $region16: #{tpu_custom_call.1} parent=1 // pred_region
      _
    $region17: #{tpu_custom_call.1} parent=1 // pred_fallthru
      _
    // Predicated region
    $region18: #{tpu_custom_call.1} parent=1 // pred_check
      _
    $region19: #{tpu_custom_call.1} parent=1 // pred_check_branch
      %22 = sbr.rel (0) target = $region21
    $region20: #{tpu_custom_call.1} parent=1 // pred_region
      _
    $region21: #{tpu_custom_call.1} parent=1 // pred_fallthru
      _
    // Predicated region
    $region22: #{tpu_custom_call.1} parent=1 // pred_check
      _
    $region23: #{tpu_custom_call.1} parent=1 // pred_check_branch
      %24 = sbr.rel (0) target = $region25
    $region24: #{tpu_custom_call.1} parent=1 // pred_region
      _
    $region25: #{tpu_custom_call.1} parent=1 // pred_fallthru
      _
    // Predicated region
    $region26: #{tpu_custom_call.1} parent=1 // pred_check
      _
    $region27: #{tpu_custom_call.1} parent=1 // pred_check_branch
      %26 = sbr.rel (0) target = $region29
    $region28: #{tpu_custom_call.1} parent=1 // pred_region
      _
    $region29: #{tpu_custom_call.1} parent=1 // pred_fallthru
      _
    %v28 = vld [vmem:[%s0] sm:$0xf]
    %v29 = vld [vmem:[%s0 + $0x4] sm:$0xf]
    %v30 = vld [vmem:[%s1] sm:$0xf]
    %v31 = vld [vmem:[%s1 + $0x4] sm:$0xf]
    %v32 = vld [vmem:[%s1 + $0x8] sm:$0xf]
    %v33 = vld [vmem:[%s1 + $0xc] sm:$0xf]
    %v34 = vld [vmem:[%s2] sm:$0x1]
    %v36 = vlaneseq
    %v37 = vshrl.u32 %v36, 7
    %v38 = vsub.s32 0, %v37
    %v39 = vrot.slane %v34, %v38
    %v43 = vunpack.c.l.b16 %v28
    %v44 = vunpack.c.l.b16 %v29
    %v45 = vpack.c.b16 %v44, %v43
    %v50 = vunpack.c.l.b16 %v30
    %v51 = vunpack.c.l.b16 %v31
    %v52 = vunpack.c.l.b16 %v32
    %v53 = vunpack.c.l.b16 %v33
    %v54 = vpack.c.b16 %v51, %v50
    %v55 = vpack.c.b16 %v53, %v52
    %vm58 = vcmask 261120
    %v60 = vsel %vm58, %v45, 0
    %62 = vmatprep.subr.bf16.mxu0 0
    %63 = vmatpush1.bf16.msra.mxu0 0
    %64 = vmatprep.subr.bf16.mxu0 0
    %65 = vmatpush1.bf16.msra.mxu0 0
    %66 = vmatprep.subr.bf16.mxu0 0
    %67 = vmatpush1.bf16.msra.mxu0 0
    %68 = vmatprep.subr.bf16.mxu0 0
    %69 = vmatpush1.bf16.msra.mxu0 0
    %70 = vmatprep.subr.bf16.mxu0 0
    %71 = vmatpush1.bf16.msra.mxu0 0
    %72 = vmatprep.subr.bf16.mxu0 0
    %73 = vmatpush1.bf16.msra.mxu0 0
    %74 = vmatprep.subr.bf16.mxu0 0
    %75 = vmatpush1.bf16.msra.mxu0 %v55
    %76 = vmatprep.subr.bf16.mxu0 0
    %77 = vmatpush1.bf16.msra.mxu0 %v54
    %78 = vmatprep.subr.bf16.mxu0 0
    %79 = vmatpush2.bf16.msra.mxu0 0
    %80 = vmatprep.subr.bf16.mxu0 0
    %81 = vmatpush2.bf16.msra.mxu0 0
    %82 = vmatprep.subr.bf16.mxu0 0
    %83 = vmatpush2.bf16.msra.mxu0 0
    %84 = vmatprep.subr.bf16.mxu0 0
    %85 = vmatpush2.bf16.msra.mxu0 0
    %86 = vmatprep.subr.bf16.mxu0 0
    %87 = vmatpush2.bf16.msra.mxu0 0
    %88 = vmatprep.subr.bf16.mxu0 0
    %89 = vmatpush2.bf16.msra.mxu0 0
    %90 = vmatprep.subr.bf16.mxu0 0
    %91 = vmatpush2.bf16.msra.mxu0 0
    %92 = vmatprep.subr.bf16.mxu0 0
    %93 = vmatpush2.bf16.msra.mxu0 0
    %94 = vmatprep.mubr.bf16.mxu0 0
    %95 = vmatmul.mubr.bf16.gmra.mxu0 %v60
    %v96 = vpop.f32.mrf.mxu0
    %v97 = vadd.f32 %v39, %v96
    %v98 = vpop.f32.mrf.mxu0
    %v99 = vpop.f32.mrf.mxu0
    %v100 = vadd.f32 %v39, %v99
    %v101 = vpop.f32.mrf.mxu0
    %102 = vdwg.mxu0
    %v103 = vpack.c.bf16 %v100, %v97
    %v104 = vld [vmem:[%s5] sm:$0x1]
    %v105 = vld [vmem:[%s5 + $0x1] sm:$0x1]
    %v106 = vld [vmem:[%s5 + $0x2] sm:$0x1]
    %v107 = vld [vmem:[%s5 + $0x3] sm:$0x1]
    %v108 = vld [vmem:[%s6] sm:$0xff]
    %v109 = vld [vmem:[%s6 + $0x8] sm:$0xff]
    %v110 = vld [vmem:[%s6 + $0x10] sm:$0xff]
    %v111 = vld [vmem:[%s6 + $0x18] sm:$0xff]
    %v112 = vld [vmem:[%s6 + $0x20] sm:$0xff]
    %v113 = vld [vmem:[%s6 + $0x28] sm:$0xff]
    %v114 = vld [vmem:[%s6 + $0x30] sm:$0xff]
    %v115 = vld [vmem:[%s6 + $0x38] sm:$0xff]
    %v117 = vpack.i.b16 %v104, %v104
    %v119 = vlaneseq
    %v120 = vshrl.u32 %v119, 7
    %v121 = vsub.s32 0, %v120
    %v122 = vrot.slane %v117, %v121
    %v124 = vpack.i.b16 %v105, %v105
    %v126 = vlaneseq
    %v127 = vshrl.u32 %v126, 7
    %v128 = vsub.s32 0, %v127
    %v129 = vrot.slane %v124, %v128
    %v131 = vpack.i.b16 %v106, %v106
    %v133 = vlaneseq
    %v134 = vshrl.u32 %v133, 7
    %v135 = vsub.s32 0, %v134
    %v136 = vrot.slane %v131, %v135
    %v138 = vpack.i.b16 %v107, %v107
    %v140 = vlaneseq
    %v141 = vshrl.u32 %v140, 7
    %v142 = vsub.s32 0, %v141
    %v143 = vrot.slane %v138, %v142
    %v144 = vmul.bf16 %v103, %v122
    %v145 = vmul.bf16 %v103, %v129
    %v146 = vmul.bf16 %v103, %v136
    %v147 = vmul.bf16 %v103, %v143
    %149 = vrot.lane.b32.xlu0 %v103, 96
    %v150 = vpop.permute.xlu0 %149
    %v152 = vsel %vm58, %v144, 0
    %v155 = vsel %vm58, %v145, 0
    %v158 = vsel %vm58, %v146, 0
    %v161 = vsel %vm58, %v147, 0
    %v164 = vsel %vm58, %v150, 0
    %166 = vmatprep.subr.bf16.mxu0 0
    %167 = vmatpush1.bf16.xpose.msra.mxu0 0
    %168 = vmatprep.subr.bf16.mxu0 0
    %169 = vmatpush1.bf16.xpose.msra.mxu0 0
    %170 = vmatprep.subr.bf16.mxu0 0
    %171 = vmatpush1.bf16.xpose.msra.mxu0 0
    %172 = vmatprep.subr.bf16.mxu0 0
    %173 = vmatpush1.bf16.xpose.msra.mxu0 0
    %174 = vmatprep.subr.bf16.mxu0 0
    %175 = vmatpush1.bf16.xpose.msra.mxu0 0
    %176 = vmatprep.subr.bf16.mxu0 0
    %177 = vmatpush1.bf16.xpose.msra.mxu0 0
    %178 = vmatprep.subr.bf16.mxu0 0
    %179 = vmatpush1.bf16.xpose.msra.mxu0 0
    %180 = vmatprep.subr.bf16.mxu0 0
    %181 = vmatpush1.bf16.xpose.msra.mxu0 %v164
    %182 = vmatprep.subr.bf16.mxu0 0
    %183 = vmatpush2.bf16.xpose.msra.mxu0 0
    %184 = vmatprep.subr.bf16.mxu0 0
    %185 = vmatpush2.bf16.xpose.msra.mxu0 0
    %186 = vmatprep.subr.bf16.mxu0 0
    %187 = vmatpush2.bf16.xpose.msra.mxu0 0
    %188 = vmatprep.subr.bf16.mxu0 0
    %189 = vmatpush2.bf16.xpose.msra.mxu0 0
    %190 = vmatprep.subr.bf16.mxu0 0
    %191 = vmatpush2.bf16.xpose.msra.mxu0 0
    %192 = vmatprep.subr.bf16.mxu0 0
    %193 = vmatpush2.bf16.xpose.msra.mxu0 0
    %194 = vmatprep.subr.bf16.mxu0 0
    %195 = vmatpush2.bf16.xpose.msra.mxu0 0
    %196 = vmatprep.subr.bf16.mxu0 0
    %197 = vmatpush2.bf16.xpose.msra.mxu0 0
    %198 = vmatprep.mubr.bf16.mxu0 0
    %199 = vmatmul.mubr.bf16.gmra.mxu0 %v152
    %v200 = vpop.f32.mrf.mxu0
    %v201 = vadd.f32 %v108, %v200
    %v202 = vpop.f32.mrf.mxu0
    %v203 = vpop.f32.mrf.mxu0
    %v204 = vadd.f32 %v109, %v203
    %v205 = vpop.f32.mrf.mxu0
    %206 = vmatprep.mubr.bf16.mxu0 0
    %207 = vmatmul.mubr.bf16.gmra.mxu0 %v155
    %v208 = vpop.f32.mrf.mxu0
    %v209 = vadd.f32 %v110, %v208
    %v210 = vpop.f32.mrf.mxu0
    %v211 = vpop.f32.mrf.mxu0
    %v212 = vadd.f32 %v111, %v211
    %v213 = vpop.f32.mrf.mxu0
    %214 = vmatprep.mubr.bf16.mxu0 0
    %215 = vmatmul.mubr.bf16.gmra.mxu0 %v158
    %v216 = vpop.f32.mrf.mxu0
    %v217 = vadd.f32 %v112, %v216
    %v218 = vpop.f32.mrf.mxu0
    %v219 = vpop.f32.mrf.mxu0
    %v220 = vadd.f32 %v113, %v219
    %v221 = vpop.f32.mrf.mxu0
    %222 = vmatprep.mubr.bf16.mxu0 0
    %223 = vmatmul.mubr.bf16.gmra.mxu0 %v161
    %v224 = vpop.f32.mrf.mxu0
    %v225 = vadd.f32 %v114, %v224
    %v226 = vpop.f32.mrf.mxu0
    %v227 = vpop.f32.mrf.mxu0
    %v228 = vadd.f32 %v115, %v227
    %v229 = vpop.f32.mrf.mxu0
    %230 = vdwg.mxu0
    %vm231 = vcmask 130048
    %v232 = vsel %vm231, %v201, -inf
    %233 = vmax.xlane.f32.xlu0 %v232
    %v234 = vpop.xlane.xlu0 %233
    %v235 = vsel %vm231, %v204, -inf
    %236 = vmax.xlane.f32.xlu0 %v235
    %v237 = vpop.xlane.xlu0 %236
    %v238 = vsel %vm231, %v209, -inf
    %239 = vmax.xlane.f32.xlu0 %v238
    %v240 = vpop.xlane.xlu0 %239
    %v241 = vsel %vm231, %v212, -inf
    %242 = vmax.xlane.f32.xlu0 %v241
    %v243 = vpop.xlane.xlu0 %242
    %v244 = vsel %vm231, %v217, -inf
    %245 = vmax.xlane.f32.xlu0 %v244
    %v246 = vpop.xlane.xlu0 %245
    %v247 = vsel %vm231, %v220, -inf
    %248 = vmax.xlane.f32.xlu0 %v247
    %v249 = vpop.xlane.xlu0 %248
    %v250 = vsel %vm231, %v225, -inf
    %251 = vmax.xlane.f32.xlu0 %v250
    %v252 = vpop.xlane.xlu0 %251
    %v253 = vsel %vm231, %v228, -inf
    %254 = vmax.xlane.f32.xlu0 %v253
    %v255 = vpop.xlane.xlu0 %254
    %v256 = vsub.f32 %v201, %v234
    %v257 = vsub.f32 %v204, %v237
    %v258 = vsub.f32 %v209, %v240
    %v259 = vsub.f32 %v212, %v243
    %v260 = vsub.f32 %v217, %v246
    %v261 = vsub.f32 %v220, %v249
    %v262 = vsub.f32 %v225, %v252
    %v263 = vsub.f32 %v228, %v255
    %v264 = vmul.f32 %v256, 1.442695
    %v265 = vpow.pop %v264
    %v266 = vmul.f32 %v257, 1.442695
    %v267 = vpow.pop %v266
    %v268 = vmul.f32 %v258, 1.442695
    %v269 = vpow.pop %v268
    %v270 = vmul.f32 %v259, 1.442695
    %v271 = vpow.pop %v270
    %v272 = vmul.f32 %v260, 1.442695
    %v273 = vpow.pop %v272
    %v274 = vmul.f32 %v261, 1.442695
    %v275 = vpow.pop %v274
    %v276 = vmul.f32 %v262, 1.442695
    %v277 = vpow.pop %v276
    %v278 = vmul.f32 %v263, 1.442695
    %v279 = vpow.pop %v278
    %v280 = vsel %vm231, %v265, 0.0
    %281 = vadd.xlane.f32.xlu0 %v280
    %v282 = vpop.xlane.xlu0 %281
    %v283 = vsel %vm231, %v267, 0.0
    %284 = vadd.xlane.f32.xlu0 %v283
    %v285 = vpop.xlane.xlu0 %284
    %v286 = vsel %vm231, %v269, 0.0
    %287 = vadd.xlane.f32.xlu0 %v286
    %v288 = vpop.xlane.xlu0 %287
    %v289 = vsel %vm231, %v271, 0.0
    %290 = vadd.xlane.f32.xlu0 %v289
    %v291 = vpop.xlane.xlu0 %290
    %v292 = vsel %vm231, %v273, 0.0
    %293 = vadd.xlane.f32.xlu0 %v292
    %v294 = vpop.xlane.xlu0 %293
    %v295 = vsel %vm231, %v275, 0.0
    %296 = vadd.xlane.f32.xlu0 %v295
    %v297 = vpop.xlane.xlu0 %296
    %v298 = vsel %vm231, %v277, 0.0
    %299 = vadd.xlane.f32.xlu0 %v298
    %v300 = vpop.xlane.xlu0 %299
    %v301 = vsel %vm231, %v279, 0.0
    %302 = vadd.xlane.f32.xlu0 %v301
    %v303 = vpop.xlane.xlu0 %302
    %v304 = vrcp.pop %v282
    %v305 = vrcp.pop %v285
    %v306 = vrcp.pop %v288
    %v307 = vrcp.pop %v291
    %v308 = vrcp.pop %v294
    %v309 = vrcp.pop %v297
    %v310 = vrcp.pop %v300
    %v311 = vrcp.pop %v303
    %v312 = vmul.f32 %v265, %v304
    %v313 = vmul.f32 %v267, %v305
    %v314 = vmul.f32 %v269, %v306
    %v315 = vmul.f32 %v271, %v307
    %v316 = vmul.f32 %v273, %v308
    %v317 = vmul.f32 %v275, %v309
    %v318 = vmul.f32 %v277, %v310
    %v319 = vmul.f32 %v279, %v311
    %v320 = vpack.c.bf16 %v313, %v312
    %v321 = vpack.c.bf16 %v315, %v314
    %v322 = vpack.c.bf16 %v317, %v316
    %v323 = vpack.c.bf16 %v319, %v318
    %324 = vrot.lane.b32.xlu0 %v103, 64
    %v325 = vpop.permute.xlu0 %324
    %v328 = vsel %vm231, %v320, 0
    %v331 = vsel %vm231, %v321, 0
    %v334 = vsel %vm231, %v322, 0
    %v337 = vsel %vm231, %v323, 0
    %339 = vmatprep.subr.bf16.mxu0 0
    %340 = vmatpush1.bf16.msra.mxu0 0
    %341 = vmatprep.subr.bf16.mxu0 0
    %342 = vmatpush1.bf16.msra.mxu0 0
    %343 = vmatprep.subr.bf16.mxu0 0
    %344 = vmatpush1.bf16.msra.mxu0 0
    %345 = vmatprep.subr.bf16.mxu0 0
    %346 = vmatpush1.bf16.msra.mxu0 0
    %347 = vmatprep.subr.bf16.mxu0 0
    %348 = vmatpush1.bf16.msra.mxu0 0
    %349 = vmatprep.subr.bf16.mxu0 0
    %350 = vmatpush1.bf16.msra.mxu0 0
    %351 = vmatprep.subr.bf16.mxu0 0
    %352 = vmatpush1.bf16.msra.mxu0 0
    %353 = vmatprep.subr.bf16.mxu0 0
    %354 = vmatpush1.bf16.msra.mxu0 %v325
    %355 = vmatprep.subr.bf16.mxu0 0
    %356 = vmatpush2.bf16.msra.mxu0 0
    %357 = vmatprep.subr.bf16.mxu0 0
    %358 = vmatpush2.bf16.msra.mxu0 0
    %359 = vmatprep.subr.bf16.mxu0 0
    %360 = vmatpush2.bf16.msra.mxu0 0
    %361 = vmatprep.subr.bf16.mxu0 0
    %362 = vmatpush2.bf16.msra.mxu0 0
    %363 = vmatprep.subr.bf16.mxu0 0
    %364 = vmatpush2.bf16.msra.mxu0 0
    %365 = vmatprep.subr.bf16.mxu0 0
    %366 = vmatpush2.bf16.msra.mxu0 0
    %367 = vmatprep.subr.bf16.mxu0 0
    %368 = vmatpush2.bf16.msra.mxu0 0
    %369 = vmatprep.subr.bf16.mxu0 0
    %370 = vmatpush2.bf16.msra.mxu0 0
    %371 = vmatprep.mubr.bf16.mxu0 0
    %372 = vmatmul.mubr.bf16.gmra.mxu0 %v328
    %v373 = vpop.f32.mrf.mxu0
    %v374 = vadd.f32 0.0, %v373
    %v375 = vpop.f32.mrf.mxu0
    %v376 = vpop.f32.mrf.mxu0
    %v377 = vadd.f32 0.0, %v376
    %v378 = vpop.f32.mrf.mxu0
    %379 = vmatprep.mubr.bf16.mxu0 0
    %380 = vmatmul.mubr.bf16.gmra.mxu0 %v331
    %v381 = vpop.f32.mrf.mxu0
    %v382 = vadd.f32 0.0, %v381
    %v383 = vpop.f32.mrf.mxu0
    %v384 = vpop.f32.mrf.mxu0
    %v385 = vadd.f32 0.0, %v384
    %v386 = vpop.f32.mrf.mxu0
    %387 = vmatprep.mubr.bf16.mxu0 0
    %388 = vmatmul.mubr.bf16.gmra.mxu0 %v334
    %v389 = vpop.f32.mrf.mxu0
    %v390 = vadd.f32 0.0, %v389
    %v391 = vpop.f32.mrf.mxu0
    %v392 = vpop.f32.mrf.mxu0
    %v393 = vadd.f32 0.0, %v392
    %v394 = vpop.f32.mrf.mxu0
    %395 = vmatprep.mubr.bf16.mxu0 0
    %396 = vmatmul.mubr.bf16.gmra.mxu0 %v337
    %v397 = vpop.f32.mrf.mxu0
    %v398 = vadd.f32 0.0, %v397
    %v399 = vpop.f32.mrf.mxu0
    %v400 = vpop.f32.mrf.mxu0
    %v401 = vadd.f32 0.0, %v400
    %v402 = vpop.f32.mrf.mxu0
    %403 = vdwg.mxu0
    %v404 = vunpack.c.l.bf16 %v104
    %v405 = vunpack.c.l.bf16 %v105
    %v406 = vunpack.c.l.bf16 %v106
    %v407 = vunpack.c.l.bf16 %v107
    %v408 = vlaneseq
    %v409 = vshrl.u32 %v408, 7
    %v410 = vsub.s32 0, %v409
    %v411 = vrot.slane %v404, %v410
    %v412 = vlaneseq
    %v413 = vshrl.u32 %v412, 7
    %v414 = vsub.s32 0, %v413
    %v415 = vrot.slane %v405, %v414
    %v416 = vlaneseq
    %v417 = vshrl.u32 %v416, 7
    %v418 = vsub.s32 0, %v417
    %v419 = vrot.slane %v406, %v418
    %v420 = vlaneseq
    %v421 = vshrl.u32 %v420, 7
    %v422 = vsub.s32 0, %v421
    %v423 = vrot.slane %v407, %v422
    %v424 = vmul.f32 %v374, %v411
    %v425 = vmul.f32 %v377, %v411
    %v426 = vmul.f32 %v382, %v415
    %v427 = vmul.f32 %v385, %v415
    %v428 = vmul.f32 %v390, %v419
    %v429 = vmul.f32 %v393, %v419
    %v430 = vmul.f32 %v398, %v423
    %v431 = vmul.f32 %v401, %v423
    %v432 = vsel %vm58, %v424, 0.0
    %v433 = vsel %vm58, %v426, 0.0
    %v434 = vadd.f32 %v432, %v433
    %v435 = vsel %vm58, %v428, 0.0
    %v436 = vadd.f32 %v434, %v435
    %v437 = vsel %vm58, %v430, 0.0
    %v438 = vadd.f32 %v436, %v437
    %v439 = vsel %vm58, %v425, 0.0
    %v440 = vsel %vm58, %v427, 0.0
    %v441 = vadd.f32 %v439, %v440
    %v442 = vsel %vm58, %v429, 0.0
    %v443 = vadd.f32 %v441, %v442
    %v444 = vsel %vm58, %v431, 0.0
    %v445 = vadd.f32 %v443, %v444
    %v446 = vpack.c.bf16 %v445, %v438
    %v448 = vunpack.c.l.b16 %v446
    %v449 = vunpack.c.h.b16 %v446
    %v450 = vpack.c.b16 %v448, %v448
    %v451 = vpack.c.b16 %v449, %v449
    %vm454 = vcmask 257024
    %455 = vst.msk [vmem:[#allocation2] sm:$0xf] %vm454, %v450
    %456 = vst.msk [vmem:[#allocation2 + $0x4] sm:$0xf] %vm454, %v451
    %v457 = vld [vmem:[#allocation2] sm:$0xf]
    %v458 = vld [vmem:[#allocation2 + $0x4] sm:$0xf]
    %v459 = vld [vmem:[%s3] sm:$0xf]
    %v460 = vld [vmem:[%s3 + $0x4] sm:$0xf]
    %v461 = vld [vmem:[%s3 + $0x8] sm:$0xf]
    %v462 = vld [vmem:[%s3 + $0xc] sm:$0xf]
    %v463 = vld [vmem:[%s4] sm:$0x1]
    %v465 = vlaneseq
    %v466 = vshrl.u32 %v465, 7
    %v467 = vsub.s32 0, %v466
    %v468 = vrot.slane %v463, %v467
    %v472 = vunpack.c.l.b16 %v457
    %v473 = vunpack.c.l.b16 %v458
    %v474 = vpack.c.b16 %v473, %v472
    %v479 = vunpack.c.l.b16 %v459
    %v480 = vunpack.c.l.b16 %v460
    %v481 = vunpack.c.l.b16 %v461
    %v482 = vunpack.c.l.b16 %v462
    %v483 = vpack.c.b16 %v480, %v479
    %v484 = vpack.c.b16 %v482, %v481
    %v488 = vsel %vm58, %v474, 0
    %490 = vmatprep.subr.bf16.mxu0 0
    %491 = vmatpush1.bf16.msra.mxu0 0
    %492 = vmatprep.subr.bf16.mxu0 0
    %493 = vmatpush1.bf16.msra.mxu0 0
    %494 = vmatprep.subr.bf16.mxu0 0
    %495 = vmatpush1.bf16.msra.mxu0 0
    %496 = vmatprep.subr.bf16.mxu0 0
    %497 = vmatpush1.bf16.msra.mxu0 0
    %498 = vmatprep.subr.bf16.mxu0 0
    %499 = vmatpush1.bf16.msra.mxu0 0
    %500 = vmatprep.subr.bf16.mxu0 0
    %501 = vmatpush1.bf16.msra.mxu0 0
    %502 = vmatprep.subr.bf16.mxu0 0
    %503 = vmatpush1.bf16.msra.mxu0 %v484
    %504 = vmatprep.subr.bf16.mxu0 0
    %505 = vmatpush1.bf16.msra.mxu0 %v483
    %506 = vmatprep.subr.bf16.mxu0 0
    %507 = vmatpush2.bf16.msra.mxu0 0
    %508 = vmatprep.subr.bf16.mxu0 0
    %509 = vmatpush2.bf16.msra.mxu0 0
    %510 = vmatprep.subr.bf16.mxu0 0
    %511 = vmatpush2.bf16.msra.mxu0 0
    %512 = vmatprep.subr.bf16.mxu0 0
    %513 = vmatpush2.bf16.msra.mxu0 0
    %514 = vmatprep.subr.bf16.mxu0 0
    %515 = vmatpush2.bf16.msra.mxu0 0
    %516 = vmatprep.subr.bf16.mxu0 0
    %517 = vmatpush2.bf16.msra.mxu0 0
    %518 = vmatprep.subr.bf16.mxu0 0
    %519 = vmatpush2.bf16.msra.mxu0 0
    %520 = vmatprep.subr.bf16.mxu0 0
    %521 = vmatpush2.bf16.msra.mxu0 0
    %522 = vmatprep.mubr.bf16.mxu0 0
    %523 = vmatmul.mubr.bf16.gmra.mxu0 %v488
    %v524 = vpop.f32.mrf.mxu0
    %v525 = vadd.f32 %v468, %v524
    %v526 = vpop.f32.mrf.mxu0
    %v527 = vpop.f32.mrf.mxu0
    %v528 = vadd.f32 %v468, %v527
    %v529 = vpop.f32.mrf.mxu0
    %530 = vdwg.mxu0
    %531 = vst.msk [vmem:[#allocation3] sm:$0xff] %vm58, %v525
    %532 = vst.msk [vmem:[#allocation3 + $0x8] sm:$0xff] %vm58, %v528
    // Predicated region
    $region30: #{tpu_custom_call.1} parent=1 // pred_check
      _
    $region31: #{tpu_custom_call.1} parent=1 // pred_check_branch
      %534 = sbr.rel (0) target = $region33
    $region32: #{tpu_custom_call.1} parent=1 // pred_region
      %s536 = ssub.s32 256, 256
      %537 = vsyncadd [#allocation4], %s536
      %s538 = sshll.u32 [#allocation3], 4
      %s539 = int_to_ptr.vmem [resolvable:$true] %s538
      %544 = dma.vmem_to_hbm [thread:$0]  %s539, 256, %s7, [#allocation4], 128, 128, 8
    $region33: #{tpu_custom_call.1} parent=1 // pred_fallthru
      _
    // Predicated region
    $region34: #{tpu_custom_call.1} parent=1 // pred_check
      _
    $region35: #{tpu_custom_call.1} parent=1 // pred_check_branch
      %546 = sbr.rel (0) target = $region37
    $region36: #{tpu_custom_call.1} parent=1 // pred_region
      %547 = dma.done [#allocation4], 256
    $region37: #{tpu_custom_call.1} parent=1 // pred_fallthru
      _
    %548 = vsyncpa [#allocation4], 1

</llo_original>
